<compile_context>
chip_gen: v7x
topology: tpu7x:2x2x1
jax: 0.10.0
libtpu: 0.0.40
codegen_flags: <defaults>
</compile_context>

<pallas_src>
import jax
import jax.numpy as jnp
from jax.experimental import pallas as pl
from jax.experimental.pallas import tpu as pltpu

IMAGE_DIMS = 28 * 28 * 1   # 784
HIDDEN = 128
OUT = 1


def _round_up(x, m):
    return ((x + m - 1) // m) * m


def discriminator_kernel(x_ref, w1_ref, b1_ref, w2r_ref, b2_ref, o_ref):
    # Layer 1: Linear(784 -> 128) on the MXU, f32 accumulate.
    h = jnp.dot(x_ref[...], w1_ref[...], preferred_element_type=jnp.float32)
    h = h + b1_ref[...]                                   # (TB, 128) f32
    # LeakyReLU(negative_slope=0.1) on the VPU (f32 intermediates).
    h = jnp.where(h > 0, h, 0.1 * h)
    # Layer 2: Linear(128 -> 1) as VPU multiply + lane reduce (avoids an N=1 MXU
    # matmul that would use 1/128..1/256 of the MXU columns at full latency).
    z = jnp.sum(h * w2r_ref[...], axis=-1, keepdims=True) + b2_ref[0]   # (TB, 1)
    # Sigmoid. Exact reciprocal on the f32 path (bit-tight vs reference); the
    # EUP approx reciprocal is used on the bf16 path where tolerance is loose.
    approx = bool(x_ref.dtype == jnp.bfloat16)
    o_ref[...] = pl.reciprocal(1.0 + jnp.exp(-z), approx=approx).astype(o_ref.dtype)


def discriminator_forward(x, w1, b1, w2, b2, *, block_b=512, use_bf16=False):
    """x: (B, 784). w1: (784, 128), b1: (1, 128), w2: (128, 1), b2: (1, 1).

    Returns (B, 1) float32 sigmoid probabilities."""
    B, D = x.shape
    assert D == IMAGE_DIMS
    x = x.astype(jnp.float32)

    # Batch tile: multiple of 8 sublanes; capped so 2 double-buffered x tiles
    # (+ ~0.5 MB of resident weights) stay well under scoped VMEM on v7x.
    tb = min(_round_up(block_b, 8), _round_up(B, 8))
    b_pad = _round_up(B, tb)
    if b_pad != B:
        x = jnp.pad(x, ((0, b_pad - B), (0, 0)))

    b1_row = jnp.asarray(b1, jnp.float32).reshape(1, HIDDEN)   # (1, 128)
    w2_row = jnp.asarray(w2, jnp.float32).reshape(1, HIDDEN)   # (1, 128) row view of (128, 1)
    b2_scalar = jnp.asarray(b2, jnp.float32).reshape(-1)       # (1,) -> SMEM

    if use_bf16:
        # Halve HBM bytes for streamed x and resident W1; accumulate stays f32.
        x = x.astype(jnp.bfloat16)
        w1 = jnp.asarray(w1, jnp.bfloat16)
    else:
        w1 = jnp.asarray(w1, jnp.float32)

    grid = (b_pad // tb,)
    out = pl.pallas_call(
        discriminator_kernel,
        out_shape=jax.ShapeDtypeStruct((b_pad, OUT), jnp.float32),
        grid_spec=pltpu.PrefetchScalarGridSpec(
            num_scalar_prefetch=0,
            grid=grid,
            in_specs=[
                # x: streamed, double-buffered per batch tile.
                pl.BlockSpec((tb, D), lambda i: (i, 0)),
                # Weights / biases: constant index map -> resident in VMEM.
                pl.BlockSpec((D, HIDDEN), lambda i: (0, 0)),     # W1 (in, out)
                pl.BlockSpec((1, HIDDEN), lambda i: (0, 0)),     # b1
                pl.BlockSpec((1, HIDDEN), lambda i: (0, 0)),     # W2 as a row
                # b2: single scalar, lives in SMEM (no padded VMEM tile).
                pl.BlockSpec(memory_space=pltpu.MemorySpace.SMEM),
            ],
            out_specs=pl.BlockSpec((tb, OUT), lambda i: (i, 0)),
        ),
        compiler_params=pltpu.CompilerParams(
            # Batch tiles are independent -> megacore sharding (2 TCs on v7x).
            dimension_semantics=("parallel",),
        ),
    )(x, w1, b1_row, w2_row, b2_scalar)
    return out[:B]


def init_params(key):
    """Deterministic init mimicking nn.Linear default: U(-1/sqrt(fan_in), +)."""
    k1, k2, k3, k4 = jax.random.split(key, 4)
    lim1 = 1.0 / jnp.sqrt(jnp.float32(IMAGE_DIMS))
    lim2 = 1.0 / jnp.sqrt(jnp.float32(HIDDEN))
    w1 = jax.random.uniform(k1, (IMAGE_DIMS, HIDDEN), jnp.float32, -lim1, lim1)
    b1 = jax.random.uniform(k2, (1, HIDDEN), jnp.float32, -lim1, lim1)
    w2 = jax.random.uniform(k3, (HIDDEN, OUT), jnp.float32, -lim2, lim2)
    b2 = jax.random.uniform(k4, (1, OUT), jnp.float32, -lim2, lim2)
    return w1, b1, w2, b2


def reference_forward(x, w1, b1, w2, b2):
    h = x @ w1 + b1
    h = jnp.where(h > 0, h, 0.1 * h)
    z = h @ w2 + b2
    return jax.nn.sigmoid(z)


if __name__ == "__main__":
    key = jax.random.PRNGKey(0)
    kx, kp, kx2 = jax.random.split(key, 3)

    w1, b1, w2, b2 = init_params(kp)

    # Small batch: single tile, f32 path, tight tolerance.
    B = 8
    x = jax.random.normal(kx, (B, IMAGE_DIMS), jnp.float32)
    out = jax.block_until_ready(discriminator_forward(x, w1, b1, w2, b2))
    ref = reference_forward(x, w1, b1, w2, b2)
    assert out.shape == (B, OUT), out.shape
    assert jnp.allclose(out, ref, atol=2e-5, rtol=2e-5), "f32 small-batch mismatch"

    # Larger batch: exercises batch tiling, padding and the parallel grid axis.
    B2 = 300
    x2 = jax.random.normal(kx2, (B2, IMAGE_DIMS), jnp.float32)
    out2 = jax.block_until_ready(
        discriminator_forward(x2, w1, b1, w2, b2, block_b=128))
    ref2 = reference_forward(x2, w1, b1, w2, b2)
    assert out2.shape == (B2, OUT), out2.shape
    assert jnp.allclose(out2, ref2, atol=2e-5, rtol=2e-5), "f32 tiled mismatch"

    # bf16 operands for the HBM-bound layer-1 matmul (looser tolerance by design).
    out3 = jax.block_until_ready(
        discriminator_forward(x2, w1, b1, w2, b2, block_b=128, use_bf16=True))
    assert out3.shape == (B2, OUT), out3.shape
    assert jnp.allclose(out3, ref2, atol=3e-2, rtol=0), "bf16 tiled mismatch"

    print("KERNEL_OK")
</pallas_src>

<mosaic_0001>
module attributes {stable_mosaic.version = 11 : i64} {
  func.func @discriminator_kernel(%arg0: i32, %arg1: memref<8x784xf32, #tpu.memory_space<vmem>>, %arg2: memref<784x128xf32, #tpu.memory_space<vmem>>, %arg3: memref<1x128xf32, #tpu.memory_space<vmem>>, %arg4: memref<1x128xf32, #tpu.memory_space<vmem>>, %arg5: memref<1xf32, #tpu.memory_space<smem>>, %arg6: memref<8x1xf32, #tpu.memory_space<vmem>>) attributes {dimension_semantics = [#tpu.dimension_semantics<parallel>], iteration_bounds = array<i64: 1>, scalar_prefetch = 0 : i64, scratch_operands = 0 : i64, tpu.core_type = #tpu.core_type<tc>, window_params = [{transform_indices = @transform_0, window_bounds = array<i64: 8, 784>}, {pipeline_mode = #tpu.pipeline_mode<synchronous>, transform_indices = @transform_1, window_bounds = array<i64: 784, 128>}, {pipeline_mode = #tpu.pipeline_mode<synchronous>, transform_indices = @transform_2, window_bounds = array<i64: 1, 128>}, {pipeline_mode = #tpu.pipeline_mode<synchronous>, transform_indices = @transform_3, window_bounds = array<i64: 1, 128>}, {transform_indices = @transform_4, window_bounds = array<i64: 1>}, {transform_indices = @transform_5, window_bounds = array<i64: 8, 1>}]} {
    %c0 = arith.constant 0 : index
    %c0_0 = arith.constant 0 : index
    %0 = vector.load %arg1[%c0, %c0_0] : memref<8x784xf32, #tpu.memory_space<vmem>>, vector<8x784xf32>
    %c0_1 = arith.constant 0 : index
    %c0_2 = arith.constant 0 : index
    %1 = vector.load %arg2[%c0_1, %c0_2] : memref<784x128xf32, #tpu.memory_space<vmem>>, vector<784x128xf32>
    %cst = arith.constant dense<0.000000e+00> : vector<8x128xf32>
    %2 = tpu.matmul %0, %1, %cst {dimension_numbers = #tpu.dot_dimension_numbers<[1], [0], [0], [1], [0, 0, 1, 1], [], []>} : vector<8x784xf32>, vector<784x128xf32>, vector<8x128xf32> -> vector<8x128xf32>
    %c0_3 = arith.constant 0 : index
    %c0_4 = arith.constant 0 : index
    %3 = vector.load %arg3[%c0_3, %c0_4] : memref<1x128xf32, #tpu.memory_space<vmem>>, vector<1x128xf32>
    %4 = vector.broadcast %3 : vector<1x128xf32> to vector<8x128xf32>
    %5 = arith.addf %2, %4 : vector<8x128xf32>
    %cst_5 = arith.constant 0.000000e+00 : f32
    %6 = vector.broadcast %cst_5 : f32 to vector<8x128xf32>
    %7 = arith.cmpf ogt, %5, %6 : vector<8x128xf32>
    %cst_6 = arith.constant 1.000000e-01 : f32
    %8 = vector.broadcast %cst_6 : f32 to vector<8x128xf32>
    %9 = arith.mulf %8, %5 : vector<8x128xf32>
    %10 = arith.select %7, %5, %9 : vector<8x128xi1>, vector<8x128xf32>
    %c0_7 = arith.constant 0 : index
    %c0_8 = arith.constant 0 : index
    %11 = vector.load %arg4[%c0_7, %c0_8] : memref<1x128xf32, #tpu.memory_space<vmem>>, vector<1x128xf32>
    %12 = vector.broadcast %11 : vector<1x128xf32> to vector<8x128xf32>
    %13 = arith.mulf %10, %12 : vector<8x128xf32>
    %cst_9 = arith.constant dense<0.000000e+00> : vector<8xf32>
    %14 = vector.multi_reduction <add>, %13, %cst_9 [1] : vector<8x128xf32> to vector<8xf32>
    %15 = vector.shape_cast %14 : vector<8xf32> to vector<8x1xf32>
    %c0_10 = arith.constant 0 : index
    %16 = memref.load %arg5[%c0_10] : memref<1xf32, #tpu.memory_space<smem>>
    %17 = vector.broadcast %16 : f32 to vector<8x1xf32>
    %18 = arith.addf %15, %17 : vector<8x1xf32>
    %cst_11 = arith.constant 0.000000e+00 : f32
    %19 = vector.broadcast %cst_11 : f32 to vector<8x1xf32>
    %20 = arith.subf %19, %18 : vector<8x1xf32>
    %21 = math.exp %20 : vector<8x1xf32>
    %cst_12 = arith.constant 1.000000e+00 : f32
    %22 = vector.broadcast %cst_12 : f32 to vector<8x1xf32>
    %23 = arith.addf %22, %21 : vector<8x1xf32>
    %24 = tpu.reciprocal %23 : vector<8x1xf32> -> vector<8x1xf32>
    %c0_13 = arith.constant 0 : index
    %c0_14 = arith.constant 0 : index
    %25 = vector.load %arg6[%c0_13, %c0_14] : memref<8x1xf32, #tpu.memory_space<vmem>>, vector<8x1xf32>
    tpu.vector_store %arg6[%c0_13, %c0_14], %24 {strides = array<i32>} : memref<8x1xf32, #tpu.memory_space<vmem>>, vector<8x1xf32>,
    return
  }
  func.func @transform_0(%arg0: i32) -> (i32, i32) {
    %c0_i32 = arith.constant 0 : i32
    %c0_i32_0 = arith.constant 0 : i32
    return %arg0, %c0_i32 : i32, i32
  }
  func.func @transform_1(%arg0: i32) -> (i32, i32) {
    %c0_i32 = arith.constant 0 : i32
    %c0_i32_0 = arith.constant 0 : i32
    %c0_i32_1 = arith.constant 0 : i32
    return %c0_i32, %c0_i32_0 : i32, i32
  }
  func.func @transform_2(%arg0: i32) -> (i32, i32) {
    %c0_i32 = arith.constant 0 : i32
    %c0_i32_0 = arith.constant 0 : i32
    %c0_i32_1 = arith.constant 0 : i32
    return %c0_i32, %c0_i32_0 : i32, i32
  }
  func.func @transform_3(%arg0: i32) -> (i32, i32) {
    %c0_i32 = arith.constant 0 : i32
    %c0_i32_0 = arith.constant 0 : i32
    %c0_i32_1 = arith.constant 0 : i32
    return %c0_i32, %c0_i32_0 : i32, i32
  }
  func.func @transform_4(%arg0: i32) -> i32 {
    %c0_i32 = arith.constant 0 : i32
    %c0_i32_0 = arith.constant 0 : i32
    return %c0_i32 : i32
  }
  func.func @transform_5(%arg0: i32) -> (i32, i32) {
    %c0_i32 = arith.constant 0 : i32
    %c0_i32_0 = arith.constant 0 : i32
    return %arg0, %c0_i32 : i32, i32
  }
}

</mosaic_0001>

<llo_original>
// kernel: tpu_custom_call.1
$region0: #{tpu_custom_call.1}
  #allocation0 [shape = 'u32[]', space=smem, size = 0x4, offset = 0x4, fixed_abs, tag = 'smem constant byte address 0x4 - core index']
  #allocation1 [shape = 'u32[144,128]{1,0:T(1,128)}', space=vmem, size = 0x12000, scoped, tag = 'internal scratch']
  #allocation2 [shape = 'f32[1]{0:T(128)S(6)}', space=smem, size = 0x200, scoped, tag = 'scoped memory for tpu_custom_call.1']
  %s0 = inlined_call_operand.hbm [shape: f32[8,784], index: 0, kind: input, shape index: {}]
  %s1 = inlined_call_operand.hbm [shape: f32[784,128], index: 1, kind: input, shape index: {}]
  %s2 = inlined_call_operand.vmem [shape: f32[1,128], index: 2, kind: input, shape index: {}]
  %s3 = inlined_call_operand.vmem [shape: f32[1,128], index: 3, kind: input, shape index: {}]
  %s4 = inlined_call_operand.<no memory space> [shape: f32[1], index: 4, kind: input, shape index: {}]
  %s5 = inlined_call_operand.vmem [shape: f32[8,1], index: 5, kind: output, shape index: {}]
  %s6 = sld [smem:[#allocation0]]
  $region38: #{tpu_custom_call.1} parent=0
    _
  %s8 = ssub.s32 1, %s6
  %s9 = scalar_select 0, %s8, %s6
  %10 = sst [smem:[#allocation2]] %s4
  $region1: #{tpu_custom_call.1} parent=0
    #allocation3 [shape = 'u8[28672]{0}', space=vmem, size = 0x7000, scoped, tag = 'input window, operand 0, single buffered']
    #allocation4 [shape = 's32[1]{0}', space=sflag, size = 0x4, scoped, tag = 'scoped memory for tpu_custom_call.1']
    #allocation5 [shape = 'u8[401408]{0}', space=vmem, size = 0x62000, scoped, tag = 'input window, operand 1, single buffered']
    #allocation6 [shape = 's32[1]{0}', space=sflag, size = 0x4, scoped, tag = 'scoped memory for tpu_custom_call.1']
    %11 = vsyncpa [#allocation4], 0
    %12 = vsyncpa [#allocation6], 0
    // Predicated region
    $region2: #{tpu_custom_call.1} parent=1 // pred_check
      _
    $region3: #{tpu_custom_call.1} parent=1 // pred_check_branch
      %14 = sbr.rel (0) target = $region5
    $region4: #{tpu_custom_call.1} parent=1 // pred_region
      %s16 = ssub.s32 896, 896
      %17 = vsyncadd [#allocation4], %s16
      %s19 = sshll.u32 [#allocation3], 4
      %s20 = int_to_ptr.vmem [resolvable:$true] %s19
      %22 = dma.hbm_to_vmem [thread:$0]  %s0, 896, %s20, [#allocation4]
    $region5: #{tpu_custom_call.1} parent=1 // pred_fallthru
      _
    // Predicated region
    $region6: #{tpu_custom_call.1} parent=1 // pred_check
      _
    $region7: #{tpu_custom_call.1} parent=1 // pred_check_branch
      %24 = sbr.rel (0) target = $region9
    $region8: #{tpu_custom_call.1} parent=1 // pred_region
      %s26 = ssub.s32 12544, 12544
      %27 = vsyncadd [#allocation6], %s26
      %s28 = sshll.u32 [#allocation5], 4
      %s29 = int_to_ptr.vmem [resolvable:$true] %s28
      %34 = dma.hbm_to_vmem [thread:$0]  %s1, 12544, %s29, [#allocation6], 128, 128, 8
    $region9: #{tpu_custom_call.1} parent=1 // pred_fallthru
      _
    // Predicated region
    $region10: #{tpu_custom_call.1} parent=1 // pred_check
      _
    $region11: #{tpu_custom_call.1} parent=1 // pred_check_branch
      %36 = sbr.rel (0) target = $region13
    $region12: #{tpu_custom_call.1} parent=1 // pred_region
      _
    $region13: #{tpu_custom_call.1} parent=1 // pred_fallthru
      _
    // Predicated region
    $region14: #{tpu_custom_call.1} parent=1 // pred_check
      _
    $region15: #{tpu_custom_call.1} parent=1 // pred_check_branch
      %38 = sbr.rel (0) target = $region17
    $region16: #{tpu_custom_call.1} parent=1 // pred_region
      _
    $region17: #{tpu_custom_call.1} parent=1 // pred_fallthru
      _
    // Predicated region
    $region18: #{tpu_custom_call.1} parent=1 // pred_check
      _
    $region19: #{tpu_custom_call.1} parent=1 // pred_check_branch
      %40 = sbr.rel (0) target = $region21
    $region20: #{tpu_custom_call.1} parent=1 // pred_region
      _
    $region21: #{tpu_custom_call.1} parent=1 // pred_fallthru
      _
    // Predicated region
    $region22: #{tpu_custom_call.1} parent=1 // pred_check
      _
    $region23: #{tpu_custom_call.1} parent=1 // pred_check_branch
      %42 = sbr.rel (0) target = $region25
    $region24: #{tpu_custom_call.1} parent=1 // pred_region
      %43 = dma.done [#allocation4], 896
    $region25: #{tpu_custom_call.1} parent=1 // pred_fallthru
      _
    // Predicated region
    $region26: #{tpu_custom_call.1} parent=1 // pred_check
      _
    $region27: #{tpu_custom_call.1} parent=1 // pred_check_branch
      %45 = sbr.rel (0) target = $region29
    $region28: #{tpu_custom_call.1} parent=1 // pred_region
      %46 = dma.done [#allocation6], 12544
    $region29: #{tpu_custom_call.1} parent=1 // pred_fallthru
      _
    %v47 = vld [vmem:[#allocation3] sm:$0xff]
    %v48 = vld [vmem:[#allocation3 + $0x8] sm:$0xff]
    %v49 = vld [vmem:[#allocation3 + $0x10] sm:$0xff]
    %v50 = vld [vmem:[#allocation3 + $0x18] sm:$0xff]
    %v51 = vld [vmem:[#allocation3 + $0x20] sm:$0xff]
    %v52 = vld [vmem:[#allocation3 + $0x28] sm:$0xff]
    %v53 = vld [vmem:[#allocation3 + $0x30] sm:$0xff]
    %v54 = vld [vmem:[#allocation5] sm:$0xff]
    %v55 = vld [vmem:[#allocation5 + $0x8] sm:$0xff]
    %v56 = vld [vmem:[#allocation5 + $0x10] sm:$0xff]
    %v57 = vld [vmem:[#allocation5 + $0x18] sm:$0xff]
    %v58 = vld [vmem:[#allocation5 + $0x20] sm:$0xff]
    %v59 = vld [vmem:[#allocation5 + $0x28] sm:$0xff]
    %v60 = vld [vmem:[#allocation5 + $0x30] sm:$0xff]
    %v61 = vld [vmem:[#allocation5 + $0x38] sm:$0xff]
    %v62 = vld [vmem:[#allocation5 + $0x40] sm:$0xff]
    %v63 = vld [vmem:[#allocation5 + $0x48] sm:$0xff]
    %v64 = vld [vmem:[#allocation5 + $0x50] sm:$0xff]
    %v65 = vld [vmem:[#allocation5 + $0x58] sm:$0xff]
    %v66 = vld [vmem:[#allocation5 + $0x60] sm:$0xff]
    %v67 = vld [vmem:[#allocation5 + $0x68] sm:$0xff]
    %v68 = vld [vmem:[#allocation5 + $0x70] sm:$0xff]
    %v69 = vld [vmem:[#allocation5 + $0x78] sm:$0xff]
    %v70 = vld [vmem:[#allocation5 + $0x80] sm:$0xff]
    %v71 = vld [vmem:[#allocation5 + $0x88] sm:$0xff]
    %v72 = vld [vmem:[#allocation5 + $0x90] sm:$0xff]
    %v73 = vld [vmem:[#allocation5 + $0x98] sm:$0xff]
    %v74 = vld [vmem:[#allocation5 + $0xa0] sm:$0xff]
    %v75 = vld [vmem:[#allocation5 + $0xa8] sm:$0xff]
    %v76 = vld [vmem:[#allocation5 + $0xb0] sm:$0xff]
    %v77 = vld [vmem:[#allocation5 + $0xb8] sm:$0xff]
    %v78 = vld [vmem:[#allocation5 + $0xc0] sm:$0xff]
    %v79 = vld [vmem:[#allocation5 + $0xc8] sm:$0xff]
    %v80 = vld [vmem:[#allocation5 + $0xd0] sm:$0xff]
    %v81 = vld [vmem:[#allocation5 + $0xd8] sm:$0xff]
    %v82 = vld [vmem:[#allocation5 + $0xe0] sm:$0xff]
    %v83 = vld [vmem:[#allocation5 + $0xe8] sm:$0xff]
    %v84 = vld [vmem:[#allocation5 + $0xf0] sm:$0xff]
    %v85 = vld [vmem:[#allocation5 + $0xf8] sm:$0xff]
    %v86 = vld [vmem:[#allocation5 + $0x100] sm:$0xff]
    %v87 = vld [vmem:[#allocation5 + $0x108] sm:$0xff]
    %v88 = vld [vmem:[#allocation5 + $0x110] sm:$0xff]
    %v89 = vld [vmem:[#allocation5 + $0x118] sm:$0xff]
    %v90 = vld [vmem:[#allocation5 + $0x120] sm:$0xff]
    %v91 = vld [vmem:[#allocation5 + $0x128] sm:$0xff]
    %v92 = vld [vmem:[#allocation5 + $0x130] sm:$0xff]
    %v93 = vld [vmem:[#allocation5 + $0x138] sm:$0xff]
    %v94 = vld [vmem:[#allocation5 + $0x140] sm:$0xff]
    %v95 = vld [vmem:[#allocation5 + $0x148] sm:$0xff]
    %v96 = vld [vmem:[#allocation5 + $0x150] sm:$0xff]
    %v97 = vld [vmem:[#allocation5 + $0x158] sm:$0xff]
    %v98 = vld [vmem:[#allocation5 + $0x160] sm:$0xff]
    %v99 = vld [vmem:[#allocation5 + $0x168] sm:$0xff]
    %v100 = vld [vmem:[#allocation5 + $0x170] sm:$0xff]
    %v101 = vld [vmem:[#allocation5 + $0x178] sm:$0xff]
    %v102 = vld [vmem:[#allocation5 + $0x180] sm:$0xff]
    %v103 = vld [vmem:[#allocation5 + $0x188] sm:$0xff]
    %v104 = vld [vmem:[#allocation5 + $0x190] sm:$0xff]
    %v105 = vld [vmem:[#allocation5 + $0x198] sm:$0xff]
    %v106 = vld [vmem:[#allocation5 + $0x1a0] sm:$0xff]
    %v107 = vld [vmem:[#allocation5 + $0x1a8] sm:$0xff]
    %v108 = vld [vmem:[#allocation5 + $0x1b0] sm:$0xff]
    %v109 = vld [vmem:[#allocation5 + $0x1b8] sm:$0xff]
    %v110 = vld [vmem:[#allocation5 + $0x1c0] sm:$0xff]
    %v111 = vld [vmem:[#allocation5 + $0x1c8] sm:$0xff]
    %v112 = vld [vmem:[#allocation5 + $0x1d0] sm:$0xff]
    %v113 = vld [vmem:[#allocation5 + $0x1d8] sm:$0xff]
    %v114 = vld [vmem:[#allocation5 + $0x1e0] sm:$0xff]
    %v115 = vld [vmem:[#allocation5 + $0x1e8] sm:$0xff]
    %v116 = vld [vmem:[#allocation5 + $0x1f0] sm:$0xff]
    %v117 = vld [vmem:[#allocation5 + $0x1f8] sm:$0xff]
    %v118 = vld [vmem:[#allocation5 + $0x200] sm:$0xff]
    %v119 = vld [vmem:[#allocation5 + $0x208] sm:$0xff]
    %v120 = vld [vmem:[#allocation5 + $0x210] sm:$0xff]
    %v121 = vld [vmem:[#allocation5 + $0x218] sm:$0xff]
    %v122 = vld [vmem:[#allocation5 + $0x220] sm:$0xff]
    %v123 = vld [vmem:[#allocation5 + $0x228] sm:$0xff]
    %v124 = vld [vmem:[#allocation5 + $0x230] sm:$0xff]
    %v125 = vld [vmem:[#allocation5 + $0x238] sm:$0xff]
    %v126 = vld [vmem:[#allocation5 + $0x240] sm:$0xff]
    %v127 = vld [vmem:[#allocation5 + $0x248] sm:$0xff]
    %v128 = vld [vmem:[#allocation5 + $0x250] sm:$0xff]
    %v129 = vld [vmem:[#allocation5 + $0x258] sm:$0xff]
    %v130 = vld [vmem:[#allocation5 + $0x260] sm:$0xff]
    %v131 = vld [vmem:[#allocation5 + $0x268] sm:$0xff]
    %v132 = vld [vmem:[#allocation5 + $0x270] sm:$0xff]
    %v133 = vld [vmem:[#allocation5 + $0x278] sm:$0xff]
    %v134 = vld [vmem:[#allocation5 + $0x280] sm:$0xff]
    %v135 = vld [vmem:[#allocation5 + $0x288] sm:$0xff]
    %v136 = vld [vmem:[#allocation5 + $0x290] sm:$0xff]
    %v137 = vld [vmem:[#allocation5 + $0x298] sm:$0xff]
    %v138 = vld [vmem:[#allocation5 + $0x2a0] sm:$0xff]
    %v139 = vld [vmem:[#allocation5 + $0x2a8] sm:$0xff]
    %v140 = vld [vmem:[#allocation5 + $0x2b0] sm:$0xff]
    %v141 = vld [vmem:[#allocation5 + $0x2b8] sm:$0xff]
    %v142 = vld [vmem:[#allocation5 + $0x2c0] sm:$0xff]
    %v143 = vld [vmem:[#allocation5 + $0x2c8] sm:$0xff]
    %v144 = vld [vmem:[#allocation5 + $0x2d0] sm:$0xff]
    %v145 = vld [vmem:[#allocation5 + $0x2d8] sm:$0xff]
    %v146 = vld [vmem:[#allocation5 + $0x2e0] sm:$0xff]
    %v147 = vld [vmem:[#allocation5 + $0x2e8] sm:$0xff]
    %v148 = vld [vmem:[#allocation5 + $0x2f0] sm:$0xff]
    %v149 = vld [vmem:[#allocation5 + $0x2f8] sm:$0xff]
    %v150 = vld [vmem:[#allocation5 + $0x300] sm:$0xff]
    %v151 = vld [vmem:[#allocation5 + $0x308] sm:$0xff]
    %v152 = vld [vmem:[%s2] sm:$0x1]
    %v154 = vlaneseq
    %v155 = vshrl.u32 %v154, 7
    %v156 = vsub.s32 0, %v155
    %v157 = vrot.slane %v152, %v156
    %vm159 = vcmask 130048
    %v161 = vsel %vm159, %v53, 0
    %163 = vmatprep.subr.mxu0 0.0
    %164 = vmatpush1.msra.mxu0 %v54
    %165 = vmatprep.subr.mxu0 0.0
    %166 = vmatpush1.msra.mxu0 %v55
    %167 = vmatprep.subr.mxu0 0.0
    %168 = vmatpush1.msra.mxu0 %v56
    %169 = vmatprep.subr.mxu0 0.0
    %170 = vmatpush1.msra.mxu0 %v57
    %171 = vmatprep.subr.mxu0 0.0
    %172 = vmatpush1.msra.mxu0 %v58
    %173 = vmatprep.subr.mxu0 0.0
    %174 = vmatpush1.msra.mxu0 %v59
    %175 = vmatprep.subr.mxu0 0.0
    %176 = vmatpush1.msra.mxu0 %v60
    %177 = vmatprep.subr.mxu0 0.0
    %178 = vmatpush1.msra.mxu0 %v61
    %179 = vmatprep.subr.mxu0 0.0
    %180 = vmatpush1.msra.mxu0 %v62
    %181 = vmatprep.subr.mxu0 0.0
    %182 = vmatpush1.msra.mxu0 %v63
    %183 = vmatprep.subr.mxu0 0.0
    %184 = vmatpush1.msra.mxu0 %v64
    %185 = vmatprep.subr.mxu0 0.0
    %186 = vmatpush1.msra.mxu0 %v65
    %187 = vmatprep.subr.mxu0 0.0
    %188 = vmatpush1.msra.mxu0 %v66
    %189 = vmatprep.subr.mxu0 0.0
    %190 = vmatpush1.msra.mxu0 %v67
    %191 = vmatprep.subr.mxu0 0.0
    %192 = vmatpush1.msra.mxu0 %v68
    %193 = vmatprep.subr.mxu0 0.0
    %194 = vmatpush1.msra.mxu0 %v69
    %195 = vmatprep.subr.mxu0 0.0
    %196 = vmatpush1.msra.mxu0 %v70
    %197 = vmatprep.subr.mxu0 0.0
    %198 = vmatpush1.msra.mxu0 %v71
    %199 = vmatprep.subr.mxu0 0.0
    %200 = vmatpush1.msra.mxu0 %v72
    %201 = vmatprep.subr.mxu0 0.0
    %202 = vmatpush1.msra.mxu0 %v73
    %203 = vmatprep.subr.mxu0 0.0
    %204 = vmatpush1.msra.mxu0 %v74
    %205 = vmatprep.subr.mxu0 0.0
    %206 = vmatpush1.msra.mxu0 %v75
    %207 = vmatprep.subr.mxu0 0.0
    %208 = vmatpush1.msra.mxu0 %v76
    %209 = vmatprep.subr.mxu0 0.0
    %210 = vmatpush1.msra.mxu0 %v77
    %211 = vmatprep.subr.mxu0 0.0
    %212 = vmatpush1.msra.mxu0 %v78
    %213 = vmatprep.subr.mxu0 0.0
    %214 = vmatpush1.msra.mxu0 %v79
    %215 = vmatprep.subr.mxu0 0.0
    %216 = vmatpush1.msra.mxu0 %v80
    %217 = vmatprep.subr.mxu0 0.0
    %218 = vmatpush1.msra.mxu0 %v81
    %219 = vmatprep.subr.mxu0 0.0
    %220 = vmatpush1.msra.mxu0 %v82
    %221 = vmatprep.subr.mxu0 0.0
    %222 = vmatpush1.msra.mxu0 %v83
    %223 = vmatprep.subr.mxu0 0.0
    %224 = vmatpush1.msra.mxu0 %v84
    %225 = vmatprep.subr.mxu0 0.0
    %226 = vmatpush1.msra.mxu0 %v85
    %227 = vmatprep.mubr.f32.mxu0 %v48
    %228 = vmatmul.mubr.f32.gmra.mrb[0].mxu0 %v47
    %v229 = vpop.f32.mrb[0].mxu0
    %v230 = vadd.f32 %v157, %v229
    %v231 = vpop.f32.mrb[0].mxu0
    %232 = vdwg.mxu0
    %233 = vmatprep.subr.mxu0 0.0
    %234 = vmatpush1.msra.mxu0 %v86
    %235 = vmatprep.subr.mxu0 0.0
    %236 = vmatpush1.msra.mxu0 %v87
    %237 = vmatprep.subr.mxu0 0.0
    %238 = vmatpush1.msra.mxu0 %v88
    %239 = vmatprep.subr.mxu0 0.0
    %240 = vmatpush1.msra.mxu0 %v89
    %241 = vmatprep.subr.mxu0 0.0
    %242 = vmatpush1.msra.mxu0 %v90
    %243 = vmatprep.subr.mxu0 0.0
    %244 = vmatpush1.msra.mxu0 %v91
    %245 = vmatprep.subr.mxu0 0.0
    %246 = vmatpush1.msra.mxu0 %v92
    %247 = vmatprep.subr.mxu0 0.0
    %248 = vmatpush1.msra.mxu0 %v93
    %249 = vmatprep.subr.mxu0 0.0
    %250 = vmatpush1.msra.mxu0 %v94
    %251 = vmatprep.subr.mxu0 0.0
    %252 = vmatpush1.msra.mxu0 %v95
    %253 = vmatprep.subr.mxu0 0.0
    %254 = vmatpush1.msra.mxu0 %v96
    %255 = vmatprep.subr.mxu0 0.0
    %256 = vmatpush1.msra.mxu0 %v97
    %257 = vmatprep.subr.mxu0 0.0
    %258 = vmatpush1.msra.mxu0 %v98
    %259 = vmatprep.subr.mxu0 0.0
    %260 = vmatpush1.msra.mxu0 %v99
    %261 = vmatprep.subr.mxu0 0.0
    %262 = vmatpush1.msra.mxu0 %v100
    %263 = vmatprep.subr.mxu0 0.0
    %264 = vmatpush1.msra.mxu0 %v101
    %265 = vmatprep.subr.mxu0 0.0
    %266 = vmatpush1.msra.mxu0 %v102
    %267 = vmatprep.subr.mxu0 0.0
    %268 = vmatpush1.msra.mxu0 %v103
    %269 = vmatprep.subr.mxu0 0.0
    %270 = vmatpush1.msra.mxu0 %v104
    %271 = vmatprep.subr.mxu0 0.0
    %272 = vmatpush1.msra.mxu0 %v105
    %273 = vmatprep.subr.mxu0 0.0
    %274 = vmatpush1.msra.mxu0 %v106
    %275 = vmatprep.subr.mxu0 0.0
    %276 = vmatpush1.msra.mxu0 %v107
    %277 = vmatprep.subr.mxu0 0.0
    %278 = vmatpush1.msra.mxu0 %v108
    %279 = vmatprep.subr.mxu0 0.0
    %280 = vmatpush1.msra.mxu0 %v109
    %281 = vmatprep.subr.mxu0 0.0
    %282 = vmatpush1.msra.mxu0 %v110
    %283 = vmatprep.subr.mxu0 0.0
    %284 = vmatpush1.msra.mxu0 %v111
    %285 = vmatprep.subr.mxu0 0.0
    %286 = vmatpush1.msra.mxu0 %v112
    %287 = vmatprep.subr.mxu0 0.0
    %288 = vmatpush1.msra.mxu0 %v113
    %289 = vmatprep.subr.mxu0 0.0
    %290 = vmatpush1.msra.mxu0 %v114
    %291 = vmatprep.subr.mxu0 0.0
    %292 = vmatpush1.msra.mxu0 %v115
    %293 = vmatprep.subr.mxu0 0.0
    %294 = vmatpush1.msra.mxu0 %v116
    %295 = vmatprep.subr.mxu0 0.0
    %296 = vmatpush1.msra.mxu0 %v117
    %297 = vmatprep.mubr.f32.mxu0 %v50
    %298 = vmatmul.mubr.f32.gmra.mrb[0].mxu0 %v49
    %v299 = vpop.f32.mrb[0].mxu0
    %v300 = vadd.f32 %v230, %v299
    %v301 = vpop.f32.mrb[0].mxu0
    %302 = vdwg.mxu0
    %303 = vmatprep.subr.mxu0 0.0
    %304 = vmatpush1.msra.mxu0 %v118
    %305 = vmatprep.subr.mxu0 0.0
    %306 = vmatpush1.msra.mxu0 %v119
    %307 = vmatprep.subr.mxu0 0.0
    %308 = vmatpush1.msra.mxu0 %v120
    %309 = vmatprep.subr.mxu0 0.0
    %310 = vmatpush1.msra.mxu0 %v121
    %311 = vmatprep.subr.mxu0 0.0
    %312 = vmatpush1.msra.mxu0 %v122
    %313 = vmatprep.subr.mxu0 0.0
    %314 = vmatpush1.msra.mxu0 %v123
    %315 = vmatprep.subr.mxu0 0.0
    %316 = vmatpush1.msra.mxu0 %v124
    %317 = vmatprep.subr.mxu0 0.0
    %318 = vmatpush1.msra.mxu0 %v125
    %319 = vmatprep.subr.mxu0 0.0
    %320 = vmatpush1.msra.mxu0 %v126
    %321 = vmatprep.subr.mxu0 0.0
    %322 = vmatpush1.msra.mxu0 %v127
    %323 = vmatprep.subr.mxu0 0.0
    %324 = vmatpush1.msra.mxu0 %v128
    %325 = vmatprep.subr.mxu0 0.0
    %326 = vmatpush1.msra.mxu0 %v129
    %327 = vmatprep.subr.mxu0 0.0
    %328 = vmatpush1.msra.mxu0 %v130
    %329 = vmatprep.subr.mxu0 0.0
    %330 = vmatpush1.msra.mxu0 %v131
    %331 = vmatprep.subr.mxu0 0.0
    %332 = vmatpush1.msra.mxu0 %v132
    %333 = vmatprep.subr.mxu0 0.0
    %334 = vmatpush1.msra.mxu0 %v133
    %335 = vmatprep.subr.mxu0 0.0
    %336 = vmatpush1.msra.mxu0 %v134
    %337 = vmatprep.subr.mxu0 0.0
    %338 = vmatpush1.msra.mxu0 %v135
    %339 = vmatprep.subr.mxu0 0.0
    %340 = vmatpush1.msra.mxu0 %v136
    %341 = vmatprep.subr.mxu0 0.0
    %342 = vmatpush1.msra.mxu0 %v137
    %343 = vmatprep.subr.mxu0 0.0
    %344 = vmatpush1.msra.mxu0 %v138
    %345 = vmatprep.subr.mxu0 0.0
    %346 = vmatpush1.msra.mxu0 %v139
    %347 = vmatprep.subr.mxu0 0.0
    %348 = vmatpush1.msra.mxu0 %v140
    %349 = vmatprep.subr.mxu0 0.0
    %350 = vmatpush1.msra.mxu0 %v141
    %351 = vmatprep.subr.mxu0 0.0
    %352 = vmatpush1.msra.mxu0 %v142
    %353 = vmatprep.subr.mxu0 0.0
    %354 = vmatpush1.msra.mxu0 %v143
    %355 = vmatprep.subr.mxu0 0.0
    %356 = vmatpush1.msra.mxu0 %v144
    %357 = vmatprep.subr.mxu0 0.0
    %358 = vmatpush1.msra.mxu0 %v145
    %359 = vmatprep.subr.mxu0 0.0
    %360 = vmatpush1.msra.mxu0 %v146
    %361 = vmatprep.subr.mxu0 0.0
    %362 = vmatpush1.msra.mxu0 %v147
    %363 = vmatprep.subr.mxu0 0.0
    %364 = vmatpush1.msra.mxu0 %v148
    %365 = vmatprep.subr.mxu0 0.0
    %366 = vmatpush1.msra.mxu0 %v149
    %367 = vmatprep.mubr.f32.mxu0 %v52
    %368 = vmatmul.mubr.f32.gmra.mrb[0].mxu0 %v51
    %v369 = vpop.f32.mrb[0].mxu0
    %v370 = vadd.f32 %v300, %v369
    %v371 = vpop.f32.mrb[0].mxu0
    %372 = vdwg.mxu0
    %373 = vmatprep.subr.mxu0 0.0
    %374 = vmatpush1.msra.mxu0 %v150
    %375 = vmatprep.subr.mxu0 0.0
    %376 = vmatpush1.msra.mxu0 %v151
    %377 = vmatprep.subr.mxu0 0.0
    %378 = vmatpush1.msra.mxu0 0.0
    %379 = vmatprep.subr.mxu0 0.0
    %380 = vmatpush1.msra.mxu0 0.0
    %381 = vmatprep.subr.mxu0 0.0
    %382 = vmatpush1.msra.mxu0 0.0
    %383 = vmatprep.subr.mxu0 0.0
    %384 = vmatpush1.msra.mxu0 0.0
    %385 = vmatprep.subr.mxu0 0.0
    %386 = vmatpush1.msra.mxu0 0.0
    %387 = vmatprep.subr.mxu0 0.0
    %388 = vmatpush1.msra.mxu0 0.0
    %389 = vmatprep.subr.mxu0 0.0
    %390 = vmatpush1.msra.mxu0 0.0
    %391 = vmatprep.subr.mxu0 0.0
    %392 = vmatpush1.msra.mxu0 0.0
    %393 = vmatprep.subr.mxu0 0.0
    %394 = vmatpush1.msra.mxu0 0.0
    %395 = vmatprep.subr.mxu0 0.0
    %396 = vmatpush1.msra.mxu0 0.0
    %397 = vmatprep.subr.mxu0 0.0
    %398 = vmatpush1.msra.mxu0 0.0
    %399 = vmatprep.subr.mxu0 0.0
    %400 = vmatpush1.msra.mxu0 0.0
    %401 = vmatprep.subr.mxu0 0.0
    %402 = vmatpush1.msra.mxu0 0.0
    %403 = vmatprep.subr.mxu0 0.0
    %404 = vmatpush1.msra.mxu0 0.0
    %405 = vmatprep.subr.mxu0 0.0
    %406 = vmatpush1.msra.mxu0 0.0
    %407 = vmatprep.subr.mxu0 0.0
    %408 = vmatpush1.msra.mxu0 0.0
    %409 = vmatprep.subr.mxu0 0.0
    %410 = vmatpush1.msra.mxu0 0.0
    %411 = vmatprep.subr.mxu0 0.0
    %412 = vmatpush1.msra.mxu0 0.0
    %413 = vmatprep.subr.mxu0 0.0
    %414 = vmatpush1.msra.mxu0 0.0
    %415 = vmatprep.subr.mxu0 0.0
    %416 = vmatpush1.msra.mxu0 0.0
    %417 = vmatprep.subr.mxu0 0.0
    %418 = vmatpush1.msra.mxu0 0.0
    %419 = vmatprep.subr.mxu0 0.0
    %420 = vmatpush1.msra.mxu0 0.0
    %421 = vmatprep.subr.mxu0 0.0
    %422 = vmatpush1.msra.mxu0 0.0
    %423 = vmatprep.subr.mxu0 0.0
    %424 = vmatpush1.msra.mxu0 0.0
    %425 = vmatprep.subr.mxu0 0.0
    %426 = vmatpush1.msra.mxu0 0.0
    %427 = vmatprep.subr.mxu0 0.0
    %428 = vmatpush1.msra.mxu0 0.0
    %429 = vmatprep.subr.mxu0 0.0
    %430 = vmatpush1.msra.mxu0 0.0
    %431 = vmatprep.subr.mxu0 0.0
    %432 = vmatpush1.msra.mxu0 0.0
    %433 = vmatprep.subr.mxu0 0.0
    %434 = vmatpush1.msra.mxu0 0.0
    %435 = vmatprep.subr.mxu0 0.0
    %436 = vmatpush1.msra.mxu0 0.0
    %437 = vmatprep.mubr.f32.mxu0 0.0
    %438 = vmatmul.mubr.f32.gmra.mrb[0].mxu0 %v161
    %v439 = vpop.f32.mrb[0].mxu0
    %v440 = vadd.f32 %v370, %v439
    %v441 = vpop.f32.mrb[0].mxu0
    %442 = vdwg.mxu0
    %vm443 = vcmp.gt.f32.partialorder %v440, 0.0
    %v444 = vmul.f32 %v440, 0.1
    %v445 = vsel %vm443, %v440, %v444
    %v446 = vld [vmem:[%s3] sm:$0x1]
    %v448 = vlaneseq
    %v449 = vshrl.u32 %v448, 7
    %v450 = vsub.s32 0, %v449
    %v451 = vrot.slane %v446, %v450
    %v453 = vmul.f32 %v445, %v451
    %454 = vadd.xlane.f32.xlu0 %v453
    %v455 = vpop.xlane.xlu0 %454
    %s456 = sld [smem:[#allocation2]]
    %v457 = vstv %s456
    %v458 = vadd.f32 %v455, %v457
    %v459 = vsub.f32 0.0, %v458
    %v460 = vmul.f32 %v459, 1.442695
    %v461 = vpow.pop %v460
    %v462 = vadd.f32 %v461, 1.0
    %v463 = vrcp.pop %v462
    %vm464 = vcmask 7168
    %465 = vst.msk [vmem:[%s5] sm:$0xff] %vm464, %v463
    // Predicated region
    $region30: #{tpu_custom_call.1} parent=1 // pred_check
      _
    $region31: #{tpu_custom_call.1} parent=1 // pred_check_branch
      %467 = sbr.rel (0) target = $region33
    $region32: #{tpu_custom_call.1} parent=1 // pred_region
      _
    $region33: #{tpu_custom_call.1} parent=1 // pred_fallthru
      _
    // Predicated region
    $region34: #{tpu_custom_call.1} parent=1 // pred_check
      _
    $region35: #{tpu_custom_call.1} parent=1 // pred_check_branch
      %469 = sbr.rel (0) target = $region37
    $region36: #{tpu_custom_call.1} parent=1 // pred_region
      _
    $region37: #{tpu_custom_call.1} parent=1 // pred_fallthru
      _
    %470 = vsyncpa [#allocation4], 1
    %471 = vsyncpa [#allocation6], 1

</llo_original>
